<compile_context>
chip_gen: v6e
topology: v6e:2x2x1
jax: 0.10.0
libtpu: 0.0.40
codegen_flags: <defaults>
</compile_context>

<pallas_src>
import functools

import jax
import jax.numpy as jnp
from jax import lax
from jax.experimental import pallas as pl
from jax.experimental.pallas import tpu as pltpu


def _round_up(x, m):
    return (x + m - 1) // m * m


def _vmem_capacity_bytes():
    """Physical VMEM of the local TPU generation (conservative fallback)."""
    try:
        return int(pltpu.get_tpu_info().vmem_capacity_bytes)
    except Exception:
        return 64 << 20          # v7x-sized: safe lower bound everywhere


def _spec(block_shape, index_map, *, buffers=None):
    """BlockSpec helper: request an explicit buffer count when supported."""
    if buffers is not None and hasattr(pl, "Buffered"):
        try:
            return pl.BlockSpec(block_shape, index_map,
                                pipeline_mode=pl.Buffered(buffers))
        except Exception:        # older jax without pipeline_mode support
            pass
    return pl.BlockSpec(block_shape, index_map)


# ----------------------------- Pallas kernels ------------------------------- #
def _dist2cycle_fused_kernel(nb_resident, tm, x_ref, nb_ref, w_ref, o_ref,
                             xbuf, xw_buf):
    """All layers fused.  grid = (n_layers, n_row_tiles), both sequential.

    x_ref  : (Np, Cp)             padded input features (fetched once)
    nb_ref : (Np, Np) or (tm, Np) resident nb, or streamed row tile (fallback)
    w_ref  : (1, Cp, Cp)          this layer's weight
    o_ref  : (Np, Cp)             resident output (written on last layer only)
    xbuf   : VMEM (Np, Cp)        current layer's input features (resident)
    xw_buf : VMEM (Np, Cp)        x @ W for the current layer (row 0 computes)
    """
    layer = pl.program_id(0)
    row = pl.program_id(1)
    last_layer = pl.num_programs(0) - 1

    @pl.when(jnp.logical_and(layer == 0, row == 0))
    def _():
        xbuf[...] = x_ref[...]

    # Feature transform, hoisted: computed once per layer, not per row tile.
    @pl.when(row == 0)
    def _():
        xw = jnp.dot(xbuf[...], w_ref[0], preferred_element_type=jnp.float32)
        xw_buf[...] = xw.astype(xw_buf.dtype)

    start = pl.multiple_of(row * tm, tm)
    nb_rows = nb_ref[pl.ds(start, tm), :] if nb_resident else nb_ref[...]

    # Message passing for this row tile on the MXU, f32 accumulate + f32 relu.
    acc = jnp.dot(nb_rows, xw_buf[...], preferred_element_type=jnp.float32)
    new_rows = jnp.maximum(acc, 0.0)

    # Only layers that feed another layer need the activation writeback.
    @pl.when(layer < last_layer)
    def _():
        xbuf[pl.ds(start, tm), :] = new_rows.astype(xbuf.dtype)

    # Only the last layer produces the (resident, lane-dense) output block;
    # HBM writeback of o_ref happens once, at the end of the grid.
    @pl.when(layer == last_layer)
    def _():
        o_ref[pl.ds(start, tm), :] = new_rows.astype(o_ref.dtype)


def _dist2cycle_layer_kernel(nb_ref, xw_ref, o_ref):
    """One layer, one row tile: relu(nb_tile @ xw).  Row axis is parallel."""
    acc = jnp.dot(nb_ref[...], xw_ref[...], preferred_element_type=jnp.float32)
    o_ref[...] = jnp.maximum(acc, 0.0).astype(o_ref.dtype)


# ------------------------------- wrapper ------------------------------------ #
@functools.partial(jax.jit, static_argnames=("tm", "compute_dtype", "mode"))
def dist2cycle_forward(x_1e, linv, adjacency, weights, *, tm=256,
                       compute_dtype=jnp.bfloat16, mode="fused"):
    """Full Dist2Cycle forward: relu((adj ⊙ Linv) @ (x @ W_l)), stacked.

    mode:
      "fused"     one pallas_call for all layers; activations, output and (if
                  it fits) nb stay resident in VMEM.  Best on v5e/v6e (1 TC).
      "per_layer" one pallas_call per layer with a row-parallel grid; lets
                  v7x's two TensorCores split the row axis.
    """
    n, c = x_1e.shape
    w = jnp.stack(weights)                      # (L, C, C)
    n_layers = w.shape[0]
    out_dtype = x_1e.dtype
    cd = jnp.dtype(compute_dtype)
    itemsize = cd.itemsize
    out_itemsize = jnp.dtype(out_dtype).itemsize

    # Fuse the neighbourhood once (shared by every layer / row tile).
    nb = adjacency * linv

    # Padding: channels -> multiple of 128 (lane-dense stores / full MXU
    # columns); rows -> row-tile multiple; tm -> sublane quantum (16 for bf16).
    cp = _round_up(c, 128)
    q = 16 if itemsize == 2 else 8
    tm_req = max(q, _round_up(tm, q))
    if n <= tm_req:
        tm_eff = _round_up(n, q)
        n_pad = tm_eff
    else:
        tm_eff = tm_req
        n_pad = _round_up(n, tm_eff)
    n_row_tiles = n_pad // tm_eff

    x_p = jnp.zeros((n_pad, cp), cd).at[:n, :c].set(x_1e.astype(cd))
    nb_p = jnp.zeros((n_pad, n_pad), cd).at[:n, :n].set(nb.astype(cd))
    w_p = jnp.zeros((n_layers, cp, cp), cd).at[:, :c, :c].set(w.astype(cd))

    # Generation-aware VMEM budget (~96 MiB on 128 MiB parts, ~48 MiB on v7x).
    capacity = _vmem_capacity_bytes()
    cap = max(capacity - (32 << 20), (capacity * 3) // 4)

    if mode == "per_layer":
        # Row-parallel per-layer pass: lets v7x's 2 TensorCores split rows.
        # x @ W_l is a small (N, Cp) matmul, left to XLA outside the kernel.
        # TODO(synk): auto-select this path on v7x for graphs with many rows.
        need = (2 * (tm_eff * n_pad + n_pad * cp) * itemsize
                + 2 * tm_eff * cp * max(itemsize, out_itemsize))
        vmem_limit = int(min(cap, max(need + (8 << 20), 32 << 20)))
        cost = pl.CostEstimate(
            flops=2 * n_pad * n_pad * cp,
            transcendentals=0,
            bytes_accessed=(n_pad * n_pad + 2 * n_pad * cp) * itemsize,
        )
        x_cur = x_p
        for l in range(n_layers):
            last = l == n_layers - 1
            xw = jnp.dot(x_cur, w_p[l],
                         preferred_element_type=jnp.float32).astype(cd)
            x_cur = pl.pallas_call(
                _dist2cycle_layer_kernel,
                out_shape=jax.ShapeDtypeStruct(
                    (n_pad, cp), out_dtype if last else cd),
                grid_spec=pltpu.PrefetchScalarGridSpec(
                    num_scalar_prefetch=0,
                    grid=(n_row_tiles,),
                    in_specs=[
                        pl.BlockSpec((tm_eff, n_pad), lambda i: (i, 0)),
                        _spec((n_pad, cp), lambda i: (0, 0), buffers=1),
                    ],
                    out_specs=pl.BlockSpec((tm_eff, cp), lambda i: (i, 0)),
                ),
                compiler_params=pltpu.CompilerParams(
                    dimension_semantics=("parallel",),
                    vmem_limit_bytes=vmem_limit,
                ),
                cost_estimate=cost,
            )(nb_p, xw)
        return x_cur[:n, :c]

    # --------------------------- fused path --------------------------------- #
    bytes_x = n_pad * cp * itemsize                  # Buffered(1), fetched once
    bytes_w = 2 * cp * cp * itemsize                 # per-layer double buffer
    bytes_out = 2 * n_pad * cp * out_itemsize        # resident output (+margin)
    bytes_scratch = 2 * n_pad * cp * itemsize        # xbuf + xw_buf
    base = bytes_x + bytes_w + bytes_out + bytes_scratch
    bytes_nb_res = n_pad * n_pad * itemsize
    bytes_nb_stream = 2 * tm_eff * n_pad * itemsize

    nb_resident = (base + bytes_nb_res + (4 << 20)) <= cap
    need = base + (bytes_nb_res if nb_resident else bytes_nb_stream)
    vmem_limit = int(min(cap, max(need + (8 << 20), 32 << 20)))

    if nb_resident:
        # nb lives in VMEM for the whole grid: one HBM read total.
        nb_spec = _spec((n_pad, n_pad), lambda l, i: (0, 0), buffers=1)
    else:
        # Fallback: stream one row tile per grid step (re-read each layer).
        nb_spec = pl.BlockSpec((tm_eff, n_pad), lambda l, i: (i, 0))

    nb_reads = 1 if nb_resident else n_layers
    cost = pl.CostEstimate(
        flops=2 * n_layers * (n_pad * n_pad * cp + n_pad * cp * cp),
        transcendentals=0,
        bytes_accessed=(nb_reads * n_pad * n_pad * itemsize
                        + n_pad * cp * itemsize
                        + n_layers * cp * cp * itemsize
                        + n_pad * cp * out_itemsize),
    )

    out = pl.pallas_call(
        functools.partial(_dist2cycle_fused_kernel, nb_resident, tm_eff),
        out_shape=jax.ShapeDtypeStruct((n_pad, cp), out_dtype),
        grid_spec=pltpu.PrefetchScalarGridSpec(
            num_scalar_prefetch=0,
            grid=(n_layers, n_row_tiles),
            in_specs=[
                _spec((n_pad, cp), lambda l, i: (0, 0), buffers=1),   # x once
                nb_spec,                                              # nb
                pl.BlockSpec((1, cp, cp), lambda l, i: (l, 0, 0)),    # W_l
            ],
            # Constant block index on both axes -> the output stays resident
            # in VMEM and is written back to HBM once, at the end of the grid.
            out_specs=pl.BlockSpec((n_pad, cp), lambda l, i: (0, 0)),
            scratch_shapes=[
                pltpu.VMEM((n_pad, cp), cd),    # xbuf  (activations, resident)
                pltpu.VMEM((n_pad, cp), cd),    # xw_buf (per-layer x @ W)
            ],
        ),
        compiler_params=pltpu.CompilerParams(
            # Layer axis carries a true dependency through xbuf; row tiles
            # share xw_buf -> both axes must stay sequential on one core.
            dimension_semantics=("arbitrary", "arbitrary"),
            vmem_limit_bytes=vmem_limit,
        ),
        cost_estimate=cost,
    )(x_p, nb_p, w_p)

    return out[:n, :c]


# --------------------------- parameter init --------------------------------- #
def xavier_uniform(key, shape, gain=1.414, dtype=jnp.float32):
    fan_in, fan_out = shape
    bound = gain * jnp.sqrt(6.0 / (fan_in + fan_out))
    return jax.random.uniform(key, shape, dtype, minval=-bound, maxval=bound)


def make_weights(key, channels, n_layers):
    keys = jax.random.split(key, n_layers)
    return tuple(xavier_uniform(k, (channels, channels)) for k in keys)


# ------------------------------ references ---------------------------------- #
def dist2cycle_reference(x_1e, linv, adjacency, weights):
    nb = adjacency * linv
    out = x_1e
    for w in weights:
        xw = jnp.dot(out, w, precision=lax.Precision.HIGHEST)
        out = jnp.maximum(jnp.dot(nb, xw, precision=lax.Precision.HIGHEST), 0.0)
    return out


def dist2cycle_reference_matched(x_1e, linv, adjacency, weights, compute_dtype):
    """Reference applying the same operand quantisation the kernel uses."""
    nb = (adjacency * linv).astype(compute_dtype)
    x = x_1e.astype(compute_dtype)
    out = x_1e
    for w in weights:
        xw = jnp.dot(x, w.astype(compute_dtype),
                     preferred_element_type=jnp.float32).astype(compute_dtype)
        out = jnp.maximum(jnp.dot(nb, xw, preferred_element_type=jnp.float32),
                          0.0)
        x = out.astype(compute_dtype)
    return out


# --------------------------------- main -------------------------------------- #
if __name__ == "__main__":
    def make_inputs(key, n_edges, channels):
        k_x, k_l, k_a = jax.random.split(key, 3)
        x = jax.random.normal(k_x, (n_edges, channels), dtype=jnp.float32)
        linv = jax.random.normal(k_l, (n_edges, n_edges), dtype=jnp.float32)
        a = (jax.random.uniform(k_a, (n_edges, n_edges)) < 0.1).astype(jnp.float32)
        adj = jnp.clip(a + a.T, 0.0, 1.0) * (1.0 - jnp.eye(n_edges, dtype=jnp.float32))
        return x, linv, adj

    key = jax.random.PRNGKey(0)
    k1, k2, kw1, kw2 = jax.random.split(key, 4)

    # Case 1: the module's example scale (128 edges, 64 channels, 2 layers).
    n, c, n_layers = 128, 64, 2
    x, linv, adj = make_inputs(k1, n, c)
    weights = make_weights(kw1, c, n_layers)

    out_f32 = jax.block_until_ready(
        dist2cycle_forward(x, linv, adj, weights, compute_dtype=jnp.float32))
    ref = dist2cycle_reference(x, linv, adj, weights)
    assert out_f32.shape == (n, c)
    assert jnp.allclose(out_f32, ref, rtol=5e-3, atol=5e-3), "f32 mismatch"

    out_bf16 = jax.block_until_ready(
        dist2cycle_forward(x, linv, adj, weights, compute_dtype=jnp.bfloat16))
    ref_bf16 = dist2cycle_reference_matched(x, linv, adj, weights, jnp.bfloat16)
    assert jnp.allclose(out_bf16, ref_bf16, rtol=2e-2, atol=2e-2), "bf16 mismatch"

    # Case 2: larger graph exercising row tiling (tm=256 -> 2 tiles) + 3 layers.
    n2, c2, n_layers2 = 512, 64, 3
    x2, linv2, adj2 = make_inputs(k2, n2, c2)
    weights2 = make_weights(kw2, c2, n_layers2)
    ref2 = dist2cycle_reference_matched(x2, linv2, adj2, weights2, jnp.bfloat16)

    out2 = jax.block_until_ready(
        dist2cycle_forward(x2, linv2, adj2, weights2, tm=256,
                           compute_dtype=jnp.bfloat16))
    assert out2.shape == (n2, c2)
    assert jnp.allclose(out2, ref2, rtol=2e-2, atol=2e-2), "fused bf16 mismatch"

    # Case 3: the row-parallel per-layer path (megacore-friendly on v7x).
    out3 = jax.block_until_ready(
        dist2cycle_forward(x2, linv2, adj2, weights2, tm=256,
                           compute_dtype=jnp.bfloat16, mode="per_layer"))
    assert out3.shape == (n2, c2)
    assert jnp.allclose(out3, ref2, rtol=2e-2, atol=2e-2), "per-layer mismatch"

    print("KERNEL_OK")
</pallas_src>

<mosaic_0001>
module attributes {stable_mosaic.version = 11 : i64} {
  func.func @_dist2cycle_fused_kernel(%arg0: i32, %arg1: i32, %arg2: memref<128x128xf32, #tpu.memory_space<vmem>>, %arg3: memref<128x128xf32, #tpu.memory_space<vmem>>, %arg4: memref<1x128x128xf32, #tpu.memory_space<vmem>>, %arg5: memref<128x128xf32, #tpu.memory_space<vmem>>, %arg6: memref<128x128xf32, #tpu.memory_space<vmem>>, %arg7: memref<128x128xf32, #tpu.memory_space<vmem>>) attributes {dimension_semantics = [#tpu.dimension_semantics<arbitrary>, #tpu.dimension_semantics<arbitrary>], iteration_bounds = array<i64: 2, 1>, scalar_prefetch = 0 : i64, scratch_operands = 2 : i64, tpu.core_type = #tpu.core_type<tc>, window_params = [{pipeline_mode = #tpu.pipeline_mode<synchronous>, transform_indices = @transform_0, window_bounds = array<i64: 128, 128>}, {pipeline_mode = #tpu.pipeline_mode<synchronous>, transform_indices = @transform_1, window_bounds = array<i64: 128, 128>}, {transform_indices = @transform_2, window_bounds = array<i64: 1, 128, 128>}, {pipeline_mode = #tpu.pipeline_mode<synchronous>, transform_indices = @transform_3, window_bounds = array<i64: 128, 128>}]} {
    %c0_i32 = arith.constant 0 : i32
    %0 = arith.cmpi eq, %arg0, %c0_i32 : i32
    %c0_i32_0 = arith.constant 0 : i32
    %1 = arith.cmpi eq, %arg1, %c0_i32_0 : i32
    %2 = arith.andi %0, %1 : i1
    %3 = arith.extui %2 : i1 to i32
    %c0_i32_1 = arith.constant 0 : i32
    %4 = arith.cmpi ne, %3, %c0_i32_1 : i32
    scf.if %4 {
      %c0_10 = arith.constant 0 : index
      %c0_11 = arith.constant 0 : index
      %22 = vector.load %arg2[%c0_10, %c0_11] : memref<128x128xf32, #tpu.memory_space<vmem>>, vector<128x128xf32>
      %c0_12 = arith.constant 0 : index
      %c0_13 = arith.constant 0 : index
      %23 = vector.load %arg6[%c0_12, %c0_13] : memref<128x128xf32, #tpu.memory_space<vmem>>, vector<128x128xf32>
      tpu.vector_store %arg6[%c0_12, %c0_13], %22 {strides = array<i32>} : memref<128x128xf32, #tpu.memory_space<vmem>>, vector<128x128xf32>,
    } else {
    }
    %c0_i32_2 = arith.constant 0 : i32
    %5 = arith.cmpi eq, %arg1, %c0_i32_2 : i32
    %6 = arith.extui %5 : i1 to i32
    %c0_i32_3 = arith.constant 0 : i32
    %7 = arith.cmpi ne, %6, %c0_i32_3 : i32
    scf.if %7 {
      %c0_10 = arith.constant 0 : index
      %c0_11 = arith.constant 0 : index
      %22 = vector.load %arg6[%c0_10, %c0_11] : memref<128x128xf32, #tpu.memory_space<vmem>>, vector<128x128xf32>
      %c0_12 = arith.constant 0 : index
      %c0_13 = arith.constant 0 : index
      %c0_14 = arith.constant 0 : index
      %23 = vector.load %arg4[%c0_12, %c0_13, %c0_14] : memref<1x128x128xf32, #tpu.memory_space<vmem>>, vector<1x128x128xf32>
      %24 = vector.shape_cast %23 : vector<1x128x128xf32> to vector<128x128xf32>
      %cst_15 = arith.constant dense<0.000000e+00> : vector<128x128xf32>
      %25 = tpu.matmul %22, %24, %cst_15 {dimension_numbers = #tpu.dot_dimension_numbers<[1], [0], [0], [1], [0, 0, 1, 1], [], []>} : vector<128x128xf32>, vector<128x128xf32>, vector<128x128xf32> -> vector<128x128xf32>
      %c0_16 = arith.constant 0 : index
      %c0_17 = arith.constant 0 : index
      %26 = vector.load %arg7[%c0_16, %c0_17] : memref<128x128xf32, #tpu.memory_space<vmem>>, vector<128x128xf32>
      tpu.vector_store %arg7[%c0_16, %c0_17], %25 {strides = array<i32>} : memref<128x128xf32, #tpu.memory_space<vmem>>, vector<128x128xf32>,
    } else {
    }
    %c128_i32 = arith.constant 128 : i32
    %8 = arith.muli %arg1, %c128_i32 : i32
    %9 = tpu.assume_multiple %8, 128 : i32
    %10 = arith.index_cast %9 : i32 to index
    %c0 = arith.constant 0 : index
    %11 = vector.load %arg3[%10, %c0] : memref<128x128xf32, #tpu.memory_space<vmem>>, vector<128x128xf32>
    %c0_4 = arith.constant 0 : index
    %c0_5 = arith.constant 0 : index
    %12 = vector.load %arg7[%c0_4, %c0_5] : memref<128x128xf32, #tpu.memory_space<vmem>>, vector<128x128xf32>
    %cst = arith.constant dense<0.000000e+00> : vector<128x128xf32>
    %13 = tpu.matmul %11, %12, %cst {dimension_numbers = #tpu.dot_dimension_numbers<[1], [0], [0], [1], [0, 0, 1, 1], [], []>} : vector<128x128xf32>, vector<128x128xf32>, vector<128x128xf32> -> vector<128x128xf32>
    %cst_6 = arith.constant 0.000000e+00 : f32
    %14 = vector.broadcast %cst_6 : f32 to vector<128x128xf32>
    %15 = arith.maximumf %13, %14 : vector<128x128xf32>
    %c1_i32 = arith.constant 1 : i32
    %16 = arith.cmpi slt, %arg0, %c1_i32 : i32
    %17 = arith.extui %16 : i1 to i32
    %c0_i32_7 = arith.constant 0 : i32
    %18 = arith.cmpi ne, %17, %c0_i32_7 : i32
    scf.if %18 {
      %22 = arith.index_cast %9 : i32 to index
      %c0_10 = arith.constant 0 : index
      %23 = vector.load %arg6[%22, %c0_10] : memref<128x128xf32, #tpu.memory_space<vmem>>, vector<128x128xf32>
      tpu.vector_store %arg6[%22, %c0_10], %15 {strides = array<i32>} : memref<128x128xf32, #tpu.memory_space<vmem>>, vector<128x128xf32>,
    } else {
    }
    %c1_i32_8 = arith.constant 1 : i32
    %19 = arith.cmpi eq, %arg0, %c1_i32_8 : i32
    %20 = arith.extui %19 : i1 to i32
    %c0_i32_9 = arith.constant 0 : i32
    %21 = arith.cmpi ne, %20, %c0_i32_9 : i32
    scf.if %21 {
      %22 = arith.index_cast %9 : i32 to index
      %c0_10 = arith.constant 0 : index
      %23 = vector.load %arg5[%22, %c0_10] : memref<128x128xf32, #tpu.memory_space<vmem>>, vector<128x128xf32>
      tpu.vector_store %arg5[%22, %c0_10], %15 {strides = array<i32>} : memref<128x128xf32, #tpu.memory_space<vmem>>, vector<128x128xf32>,
    } else {
    }
    return
  }
  func.func @transform_0(%arg0: i32, %arg1: i32) -> (i32, i32) {
    %c0_i32 = arith.constant 0 : i32
    %c0_i32_0 = arith.constant 0 : i32
    %c0_i32_1 = arith.constant 0 : i32
    return %c0_i32, %c0_i32_0 : i32, i32
  }
  func.func @transform_1(%arg0: i32, %arg1: i32) -> (i32, i32) {
    %c0_i32 = arith.constant 0 : i32
    %c0_i32_0 = arith.constant 0 : i32
    %c0_i32_1 = arith.constant 0 : i32
    return %c0_i32, %c0_i32_0 : i32, i32
  }
  func.func @transform_2(%arg0: i32, %arg1: i32) -> (i32, i32, i32) {
    %c0_i32 = arith.constant 0 : i32
    %c0_i32_0 = arith.constant 0 : i32
    %c0_i32_1 = arith.constant 0 : i32
    return %arg0, %c0_i32, %c0_i32_0 : i32, i32, i32
  }
  func.func @transform_3(%arg0: i32, %arg1: i32) -> (i32, i32) {
    %c0_i32 = arith.constant 0 : i32
    %c0_i32_0 = arith.constant 0 : i32
    %c0_i32_1 = arith.constant 0 : i32
    return %c0_i32, %c0_i32_0 : i32, i32
  }
}

</mosaic_0001>

<llo_original>
// kernel: mul.1
$region0: #{mul.1}
  #allocation0 [shape = 's32[1]{0}', space=sflag, size = 0x4, scoped, tag = 'scoped memory for mul.1']
  %s0 = inlined_call_operand.vmem [shape: f32[128,128], index: 0, kind: input, shape index: {}]
  %s1 = inlined_call_operand.vmem [shape: f32[128,128], index: 1, kind: input, shape index: {}]
  %s2 = inlined_call_operand.vmem [shape: f32[128,128], index: 2, kind: output, shape index: {}]
  %v3 = vld [vmem:[%s0] sm:$0xff]
  %v4 = vld [vmem:[%s1] sm:$0xff]
  %5 = xla_tuple %v3, %v4
  %6 = xla_tuple %5
  %v7 = vmul.f32 %v3, %v4
  %8 = xla_tuple %v7
  %9 = vst [vmem:[%s2] sm:$0xff] %v7
  %s10 = scalar_lea.vmem %s0, 8
  %v11 = vld [vmem:[%s10] sm:$0xff]
  %s12 = scalar_lea.vmem %s1, 8
  %v13 = vld [vmem:[%s12] sm:$0xff]
  %14 = xla_tuple %v11, %v13
  %15 = xla_tuple %14
  %v16 = vmul.f32 %v11, %v13
  %17 = xla_tuple %v16
  %s18 = scalar_lea.vmem %s2, 8
  %19 = vst [vmem:[%s18] sm:$0xff] %v16
  %s20 = scalar_lea.vmem %s0, 16
  %v21 = vld [vmem:[%s20] sm:$0xff]
  %s22 = scalar_lea.vmem %s1, 16
  %v23 = vld [vmem:[%s22] sm:$0xff]
  %24 = xla_tuple %v21, %v23
  %25 = xla_tuple %24
  %v26 = vmul.f32 %v21, %v23
  %27 = xla_tuple %v26
  %s28 = scalar_lea.vmem %s2, 16
  %29 = vst [vmem:[%s28] sm:$0xff] %v26
  %s30 = scalar_lea.vmem %s0, 24
  %v31 = vld [vmem:[%s30] sm:$0xff]
  %s32 = scalar_lea.vmem %s1, 24
  %v33 = vld [vmem:[%s32] sm:$0xff]
  %34 = xla_tuple %v31, %v33
  %35 = xla_tuple %34
  %v36 = vmul.f32 %v31, %v33
  %37 = xla_tuple %v36
  %s38 = scalar_lea.vmem %s2, 24
  %39 = vst [vmem:[%s38] sm:$0xff] %v36
  %s40 = scalar_lea.vmem %s0, 32
  %v41 = vld [vmem:[%s40] sm:$0xff]
  %s42 = scalar_lea.vmem %s1, 32
  %v43 = vld [vmem:[%s42] sm:$0xff]
  %44 = xla_tuple %v41, %v43
  %45 = xla_tuple %44
  %v46 = vmul.f32 %v41, %v43
  %47 = xla_tuple %v46
  %s48 = scalar_lea.vmem %s2, 32
  %49 = vst [vmem:[%s48] sm:$0xff] %v46
  %s50 = scalar_lea.vmem %s0, 40
  %v51 = vld [vmem:[%s50] sm:$0xff]
  %s52 = scalar_lea.vmem %s1, 40
  %v53 = vld [vmem:[%s52] sm:$0xff]
  %54 = xla_tuple %v51, %v53
  %55 = xla_tuple %54
  %v56 = vmul.f32 %v51, %v53
  %57 = xla_tuple %v56
  %s58 = scalar_lea.vmem %s2, 40
  %59 = vst [vmem:[%s58] sm:$0xff] %v56
  %s60 = scalar_lea.vmem %s0, 48
  %v61 = vld [vmem:[%s60] sm:$0xff]
  %s62 = scalar_lea.vmem %s1, 48
  %v63 = vld [vmem:[%s62] sm:$0xff]
  %64 = xla_tuple %v61, %v63
  %65 = xla_tuple %64
  %v66 = vmul.f32 %v61, %v63
  %67 = xla_tuple %v66
  %s68 = scalar_lea.vmem %s2, 48
  %69 = vst [vmem:[%s68] sm:$0xff] %v66
  %s70 = scalar_lea.vmem %s0, 56
  %v71 = vld [vmem:[%s70] sm:$0xff]
  %s72 = scalar_lea.vmem %s1, 56
  %v73 = vld [vmem:[%s72] sm:$0xff]
  %74 = xla_tuple %v71, %v73
  %75 = xla_tuple %74
  %v76 = vmul.f32 %v71, %v73
  %77 = xla_tuple %v76
  %s78 = scalar_lea.vmem %s2, 56
  %79 = vst [vmem:[%s78] sm:$0xff] %v76
  %s80 = scalar_lea.vmem %s0, 64
  %v81 = vld [vmem:[%s80] sm:$0xff]
  %s82 = scalar_lea.vmem %s1, 64
  %v83 = vld [vmem:[%s82] sm:$0xff]
  %84 = xla_tuple %v81, %v83
  %85 = xla_tuple %84
  %v86 = vmul.f32 %v81, %v83
  %87 = xla_tuple %v86
  %s88 = scalar_lea.vmem %s2, 64
  %89 = vst [vmem:[%s88] sm:$0xff] %v86
  %s90 = scalar_lea.vmem %s0, 72
  %v91 = vld [vmem:[%s90] sm:$0xff]
  %s92 = scalar_lea.vmem %s1, 72
  %v93 = vld [vmem:[%s92] sm:$0xff]
  %94 = xla_tuple %v91, %v93
  %95 = xla_tuple %94
  %v96 = vmul.f32 %v91, %v93
  %97 = xla_tuple %v96
  %s98 = scalar_lea.vmem %s2, 72
  %99 = vst [vmem:[%s98] sm:$0xff] %v96
  %s100 = scalar_lea.vmem %s0, 80
  %v101 = vld [vmem:[%s100] sm:$0xff]
  %s102 = scalar_lea.vmem %s1, 80
  %v103 = vld [vmem:[%s102] sm:$0xff]
  %104 = xla_tuple %v101, %v103
  %105 = xla_tuple %104
  %v106 = vmul.f32 %v101, %v103
  %107 = xla_tuple %v106
  %s108 = scalar_lea.vmem %s2, 80
  %109 = vst [vmem:[%s108] sm:$0xff] %v106
  %s110 = scalar_lea.vmem %s0, 88
  %v111 = vld [vmem:[%s110] sm:$0xff]
  %s112 = scalar_lea.vmem %s1, 88
  %v113 = vld [vmem:[%s112] sm:$0xff]
  %114 = xla_tuple %v111, %v113
  %115 = xla_tuple %114
  %v116 = vmul.f32 %v111, %v113
  %117 = xla_tuple %v116
  %s118 = scalar_lea.vmem %s2, 88
  %119 = vst [vmem:[%s118] sm:$0xff] %v116
  %s120 = scalar_lea.vmem %s0, 96
  %v121 = vld [vmem:[%s120] sm:$0xff]
  %s122 = scalar_lea.vmem %s1, 96
  %v123 = vld [vmem:[%s122] sm:$0xff]
  %124 = xla_tuple %v121, %v123
  %125 = xla_tuple %124
  %v126 = vmul.f32 %v121, %v123
  %127 = xla_tuple %v126
  %s128 = scalar_lea.vmem %s2, 96
  %129 = vst [vmem:[%s128] sm:$0xff] %v126
  %s130 = scalar_lea.vmem %s0, 104
  %v131 = vld [vmem:[%s130] sm:$0xff]
  %s132 = scalar_lea.vmem %s1, 104
  %v133 = vld [vmem:[%s132] sm:$0xff]
  %134 = xla_tuple %v131, %v133
  %135 = xla_tuple %134
  %v136 = vmul.f32 %v131, %v133
  %137 = xla_tuple %v136
  %s138 = scalar_lea.vmem %s2, 104
  %139 = vst [vmem:[%s138] sm:$0xff] %v136
  %s140 = scalar_lea.vmem %s0, 112
  %v141 = vld [vmem:[%s140] sm:$0xff]
  %s142 = scalar_lea.vmem %s1, 112
  %v143 = vld [vmem:[%s142] sm:$0xff]
  %144 = xla_tuple %v141, %v143
  %145 = xla_tuple %144
  %v146 = vmul.f32 %v141, %v143
  %147 = xla_tuple %v146
  %s148 = scalar_lea.vmem %s2, 112
  %149 = vst [vmem:[%s148] sm:$0xff] %v146
  %s150 = scalar_lea.vmem %s0, 120
  %v151 = vld [vmem:[%s150] sm:$0xff]
  %s152 = scalar_lea.vmem %s1, 120
  %v153 = vld [vmem:[%s152] sm:$0xff]
  %154 = xla_tuple %v151, %v153
  %155 = xla_tuple %154
  %v156 = vmul.f32 %v151, %v153
  %157 = xla_tuple %v156
  %s158 = scalar_lea.vmem %s2, 120
  %159 = vst [vmem:[%s158] sm:$0xff] %v156

// kernel: dist2cycle_forward.1
$region0: #{dist2cycle_forward.1}
  #allocation0 [shape = 'u32[]', space=smem, size = 0x4, offset = 0x4, fixed_abs, tag = 'smem constant byte address 0x4 - core index']
  #allocation1 [shape = 'u32[144,128]{1,0:T(1,128)}', space=vmem, size = 0x12000, scoped, tag = 'internal scratch']
  #allocation2 [shape = 'f32[128,128]{1,0:T(8,128)}', space=vmem, size = 0x10000, scoped, tag = 'scratch operand']
  #allocation3 [shape = 'f32[128,128]{1,0:T(8,128)}', space=vmem, size = 0x10000, scoped, tag = 'scratch operand']
  %s0 = inlined_call_operand.vmem [shape: f32[128,128], index: 0, kind: input, shape index: {}]
  %s1 = inlined_call_operand.vmem [shape: f32[128,128], index: 1, kind: input, shape index: {}]
  %s2 = inlined_call_operand.vmem [shape: f32[2,128,128], index: 2, kind: input, shape index: {}]
  %s3 = inlined_call_operand.vmem [shape: f32[128,128], index: 3, kind: output, shape index: {}]
  %s4 = sld [smem:[#allocation0]]
  $region61: #{dist2cycle_forward.1} parent=0
    _
  %s6 = ssub.s32 1, %s4
  %s7 = scalar_select 0, %s6, %s4
  loop: start=0, step=1, limit=4
  $region2: #{dist2cycle_forward.1} parent=0 // loop_pre_header
    _
  $region3: #{dist2cycle_forward.1} parent=0 // loop_header
    %s9 = sphi 0, %s13
    %p10 = scmp.ge.s32.totalorder %s9, 4
    %s16 = sphi 0, %s28
    %s17 = sphi 0, %s24
    %s18 = sphi 0, %s16
    %s19 = sphi 0, %s17
    %s20 = sphi 0, %s18
    %s21 = sphi 0, %s19
    %s29 = sphi 0, %s29
    %s31 = sphi 0, %s29
    %s32 = sphi 0, %s31
    %s46 = sphi 0, %s32
    %s50 = sphi 0, %s50
    %s52 = sphi 0, %s50
    %s53 = sphi 0, %s52
    %s67 = sphi 0, %s53
    %s73 = sphi 0, %s75
    %s76 = sphi 0, %s73
    %s77 = sphi 0, %s76
    %s93 = sphi 0, %s77
    %s97 = sphi 0, %s97
    %s99 = sphi 0, %s97
    %s100 = sphi 0, %s99
    %s114 = sphi 0, %s100
  $region4: #{dist2cycle_forward.1} parent=0 // loop_header_branch
    %12 = sbr.rel (%p10) target = $region8
  $region5: #{dist2cycle_forward.1} parent=0 // loop_body
    %s14 = ssub.s32 %s9, 1
    %s15 = ssub.s32 %s9, 2
    %s22 = sadd.s32 1, %s17
    %p23 = scmp.ge.s32.totalorder %s22, 1
    %s24 = scalar_select %p23, 0, %s22
    %s25 = sadd.s32 1, %s16
    %s26 = scalar_select %p23, %s25, %s16
    %p27 = scmp.ge.s32.totalorder %s26, 2
    %s28 = scalar_select %p27, 0, %s26
    %s30 = sadd.s32 %s29, 1
    %p33 = scmp.eq.s32.totalorder %s9, 1
    %p34 = scmp.ne.s32.totalorder %s29, %s31
    %p35 = scmp.eq.s32.totalorder %s9, 0
    %p36 = por %p34, %p35
    %p37 = scmp.ne.s32.totalorder %s29, %s31
    %p38 = scmp.eq.s32.totalorder %s14, 1
    %p39 = por %p37, %p38
    %p40 = scmp.ne.s32.totalorder %s31, %s32
    %p41 = scmp.eq.s32.totalorder %s14, 0
    %p42 = por %p40, %p41
    %p43 = scmp.ne.s32.totalorder %s31, %s32
    %p44 = scmp.eq.s32.totalorder %s15, 1
    %p45 = por %p43, %p44
    %p47 = scmp.ne.s32.totalorder %s32, %s46
    %p48 = scmp.eq.s32.totalorder %s15, 0
    %p49 = por %p47, %p48
    %s51 = sadd.s32 %s50, 1
    %p54 = scmp.eq.s32.totalorder %s9, 1
    %p55 = scmp.ne.s32.totalorder %s50, %s52
    %p56 = scmp.eq.s32.totalorder %s9, 0
    %p57 = por %p55, %p56
    %p58 = scmp.ne.s32.totalorder %s50, %s52
    %p59 = scmp.eq.s32.totalorder %s14, 1
    %p60 = por %p58, %p59
    %p61 = scmp.ne.s32.totalorder %s52, %s53
    %p62 = scmp.eq.s32.totalorder %s14, 0
    %p63 = por %p61, %p62
    %p64 = scmp.ne.s32.totalorder %s52, %s53
    %p65 = scmp.eq.s32.totalorder %s15, 1
    %p66 = por %p64, %p65
    %p68 = scmp.ne.s32.totalorder %s53, %s67
    %p69 = scmp.eq.s32.totalorder %s15, 0
    %p70 = por %p68, %p69
    %s71 = ssub.s32 %s16, %s28
    %p72 = scmp.eq.s32.totalorder %s71, 0
    %s74 = sadd.s32 %s73, 1
    %s75 = scalar_select %p72, %s73, %s74
    %p78 = pneg %p72
    %p79 = scmp.eq.s32.totalorder %s9, 1
    %p80 = por %p78, %p79
    %p81 = scmp.ne.s32.totalorder %s73, %s76
    %p82 = scmp.eq.s32.totalorder %s9, 0
    %p83 = por %p81, %p82
    %p84 = scmp.ne.s32.totalorder %s73, %s76
    %p85 = scmp.eq.s32.totalorder %s14, 1
    %p86 = por %p84, %p85
    %p87 = scmp.ne.s32.totalorder %s76, %s77
    %p88 = scmp.eq.s32.totalorder %s14, 0
    %p89 = por %p87, %p88
    %p90 = scmp.ne.s32.totalorder %s76, %s77
    %p91 = scmp.eq.s32.totalorder %s15, 1
    %p92 = por %p90, %p91
    %p94 = scmp.ne.s32.totalorder %s77, %s93
    %p95 = scmp.eq.s32.totalorder %s15, 0
    %p96 = por %p94, %p95
    %s98 = sadd.s32 %s97, 1
    %p101 = scmp.eq.s32.totalorder %s9, 1
    %p102 = scmp.ne.s32.totalorder %s97, %s99
    %p103 = scmp.eq.s32.totalorder %s9, 0
    %p104 = por %p102, %p103
    %p105 = scmp.ne.s32.totalorder %s97, %s99
    %p106 = scmp.eq.s32.totalorder %s14, 1
    %p107 = por %p105, %p106
    %p108 = scmp.ne.s32.totalorder %s99, %s100
    %p109 = scmp.eq.s32.totalorder %s14, 0
    %p110 = por %p108, %p109
    %p111 = scmp.ne.s32.totalorder %s99, %s100
    %p112 = scmp.eq.s32.totalorder %s15, 1
    %p113 = por %p111, %p112
    %p115 = scmp.ne.s32.totalorder %s100, %s114
    %p116 = scmp.eq.s32.totalorder %s15, 0
    %p117 = por %p115, %p116
    %p118 = scmp.le.s32.totalorder 1, %s9
    %p119 = scmp.lt.s32.totalorder %s9, 3
    %p120 = pnand %p118, %p119
    %p121 = pneg %p120
    // Predicated region
    $region9: #{dist2cycle_forward.1} parent=5 // pred_check
      _
    $region10: #{dist2cycle_forward.1} parent=5 // pred_check_branch
      %123 = sbr.rel (%p120) target = $region12
    $region11: #{dist2cycle_forward.1} parent=5 // pred_region
      %s124 = ssub.s32 %s9, 1
      // Predicated region
      $region13: #{dist2cycle_forward.1} parent=11 // pred_check
        %p125 = pneg %p42
      $region14: #{dist2cycle_forward.1} parent=11 // pred_check_branch
        %127 = sbr.rel (%p125) target = $region16
      $region15: #{dist2cycle_forward.1} parent=11 // pred_region
        _
      $region16: #{dist2cycle_forward.1} parent=11 // pred_fallthru
        _
      // Predicated region
      $region17: #{dist2cycle_forward.1} parent=11 // pred_check
        %p128 = pneg %p63
      $region18: #{dist2cycle_forward.1} parent=11 // pred_check_branch
        %130 = sbr.rel (%p128) target = $region20
      $region19: #{dist2cycle_forward.1} parent=11 // pred_region
        _
      $region20: #{dist2cycle_forward.1} parent=11 // pred_fallthru
        _
    $region12: #{dist2cycle_forward.1} parent=5 // pred_fallthru
      _
    %p131 = scmp.lt.s32.totalorder %s9, 2
    // Predicated region
    $region21: #{dist2cycle_forward.1} parent=5 // pred_check
      %p132 = pneg %p131
    $region22: #{dist2cycle_forward.1} parent=5 // pred_check_branch
      %134 = sbr.rel (%p132) target = $region24
    $region23: #{dist2cycle_forward.1} parent=5 // pred_region
      // Predicated region
      $region25: #{dist2cycle_forward.1} parent=23 // pred_check
        %p135 = pneg %p83
      $region26: #{dist2cycle_forward.1} parent=23 // pred_check_branch
        %137 = sbr.rel (%p135) target = $region28
      $region27: #{dist2cycle_forward.1} parent=23 // pred_region
        %p138 = scmp.lt.s32.totalorder %s16, 1
        %s139 = scalar_select %p138, %s16, 1
        %s140 = smul.addr %s139, 16
        %s141 = smul.addr %s140, 8
        %s142 = scalar_lea.vmem %s2, %s141
      $region28: #{dist2cycle_forward.1} parent=23 // pred_fallthru
        _
    $region24: #{dist2cycle_forward.1} parent=5 // pred_fallthru
      _
    %p143 = scmp.le.s32.totalorder 1, %s9
    %p144 = scmp.lt.s32.totalorder %s9, 3
    %p145 = pnand %p143, %p144
    %p146 = pneg %p145
    // Predicated region
    $region29: #{dist2cycle_forward.1} parent=5 // pred_check
      _
    $region30: #{dist2cycle_forward.1} parent=5 // pred_check_branch
      %148 = sbr.rel (%p145) target = $region32
    $region31: #{dist2cycle_forward.1} parent=5 // pred_region
      %s149 = ssub.s32 %s9, 1
      %p150 = pneg %p42
      %p151 = pneg %p39
      %p152 = pneg %p63
      %p153 = pneg %p60
      %p154 = scmp.lt.s32.totalorder %s18, 1
      %s155 = scalar_select %p154, %s18, 1
      %s156 = smul.addr %s155, 16
      %s157 = smul.addr %s156, 8
      %s158 = scalar_lea.vmem %s2, %s157
      %p159 = pneg %p89
      %p160 = pneg %p86
      %p161 = pneg %p110
      %p162 = pneg %p107
      %p163 = scmp.lt.s32.totalorder %s18, 1
      %s164 = scalar_select %p163, %s18, 1
      %s165 = smul.addr %s164, 16
      %s166 = smul.addr %s165, 8
      %s167 = scalar_lea.vmem %s2, %s166
      %p168 = scmp.eq.s32.totalorder %s18, 0
      %p169 = scmp.eq.s32.totalorder %s19, 0
      %p170 = pnand %p168, %p169
      %p171 = pneg %p170
      // Predicated region
      $region33: #{dist2cycle_forward.1} parent=31 // pred_check
        _
      $region34: #{dist2cycle_forward.1} parent=31 // pred_check_branch
        %173 = sbr.rel (%p170) target = $region36
      $region35: #{dist2cycle_forward.1} parent=31 // pred_region
        %v174 = vld [vmem:[%s0] sm:$0xff]
        %v175 = vld [vmem:[%s0 + $0x8] sm:$0xff]
        %v176 = vld [vmem:[%s0 + $0x10] sm:$0xff]
        %v177 = vld [vmem:[%s0 + $0x18] sm:$0xff]
        %v178 = vld [vmem:[%s0 + $0x20] sm:$0xff]
        %v179 = vld [vmem:[%s0 + $0x28] sm:$0xff]
        %v180 = vld [vmem:[%s0 + $0x30] sm:$0xff]
        %v181 = vld [vmem:[%s0 + $0x38] sm:$0xff]
        %v182 = vld [vmem:[%s0 + $0x40] sm:$0xff]
        %v183 = vld [vmem:[%s0 + $0x48] sm:$0xff]
        %v184 = vld [vmem:[%s0 + $0x50] sm:$0xff]
        %v185 = vld [vmem:[%s0 + $0x58] sm:$0xff]
        %v186 = vld [vmem:[%s0 + $0x60] sm:$0xff]
        %v187 = vld [vmem:[%s0 + $0x68] sm:$0xff]
        %v188 = vld [vmem:[%s0 + $0x70] sm:$0xff]
        %v189 = vld [vmem:[%s0 + $0x78] sm:$0xff]
        %190 = vst [vmem:[#allocation2] sm:$0xff] %v174
        %191 = vst [vmem:[#allocation2 + $0x8] sm:$0xff] %v175
        %192 = vst [vmem:[#allocation2 + $0x10] sm:$0xff] %v176
        %193 = vst [vmem:[#allocation2 + $0x18] sm:$0xff] %v177
        %194 = vst [vmem:[#allocation2 + $0x20] sm:$0xff] %v178
        %195 = vst [vmem:[#allocation2 + $0x28] sm:$0xff] %v179
        %196 = vst [vmem:[#allocation2 + $0x30] sm:$0xff] %v180
        %197 = vst [vmem:[#allocation2 + $0x38] sm:$0xff] %v181
        %198 = vst [vmem:[#allocation2 + $0x40] sm:$0xff] %v182
        %199 = vst [vmem:[#allocation2 + $0x48] sm:$0xff] %v183
        %200 = vst [vmem:[#allocation2 + $0x50] sm:$0xff] %v184
        %201 = vst [vmem:[#allocation2 + $0x58] sm:$0xff] %v185
        %202 = vst [vmem:[#allocation2 + $0x60] sm:$0xff] %v186
        %203 = vst [vmem:[#allocation2 + $0x68] sm:$0xff] %v187
        %204 = vst [vmem:[#allocation2 + $0x70] sm:$0xff] %v188
        %205 = vst [vmem:[#allocation2 + $0x78] sm:$0xff] %v189
      $region36: #{dist2cycle_forward.1} parent=31 // pred_fallthru
        _
      // Predicated region
      $region37: #{dist2cycle_forward.1} parent=31 // pred_check
        %p206 = pneg %p169
      $region38: #{dist2cycle_forward.1} parent=31 // pred_check_branch
        %208 = sbr.rel (%p206) target = $region40
      $region39: #{dist2cycle_forward.1} parent=31 // pred_region
        %v209 = vld [vmem:[#allocation2] sm:$0xff]
        %v210 = vld [vmem:[#allocation2 + $0x8] sm:$0xff]
        %v211 = vld [vmem:[#allocation2 + $0x10] sm:$0xff]
        %v212 = vld [vmem:[#allocation2 + $0x18] sm:$0xff]
        %v213 = vld [vmem:[#allocation2 + $0x20] sm:$0xff]
        %v214 = vld [vmem:[#allocation2 + $0x28] sm:$0xff]
        %v215 = vld [vmem:[#allocation2 + $0x30] sm:$0xff]
        %v216 = vld [vmem:[#allocation2 + $0x38] sm:$0xff]
        %v217 = vld [vmem:[#allocation2 + $0x40] sm:$0xff]
        %v218 = vld [vmem:[#allocation2 + $0x48] sm:$0xff]
        %v219 = vld [vmem:[#allocation2 + $0x50] sm:$0xff]
        %v220 = vld [vmem:[#allocation2 + $0x58] sm:$0xff]
        %v221 = vld [vmem:[#allocation2 + $0x60] sm:$0xff]
        %v222 = vld [vmem:[#allocation2 + $0x68] sm:$0xff]
        %v223 = vld [vmem:[#allocation2 + $0x70] sm:$0xff]
        %v224 = vld [vmem:[#allocation2 + $0x78] sm:$0xff]
        %v225 = vld [vmem:[%s167] sm:$0xff]
        %v226 = vld [vmem:[%s167 + $0x8] sm:$0xff]
        %v227 = vld [vmem:[%s167 + $0x10] sm:$0xff]
        %v228 = vld [vmem:[%s167 + $0x18] sm:$0xff]
        %v229 = vld [vmem:[%s167 + $0x20] sm:$0xff]
        %v230 = vld [vmem:[%s167 + $0x28] sm:$0xff]
        %v231 = vld [vmem:[%s167 + $0x30] sm:$0xff]
        %v232 = vld [vmem:[%s167 + $0x38] sm:$0xff]
        %v233 = vld [vmem:[%s167 + $0x40] sm:$0xff]
        %v234 = vld [vmem:[%s167 + $0x48] sm:$0xff]
        %v235 = vld [vmem:[%s167 + $0x50] sm:$0xff]
        %v236 = vld [vmem:[%s167 + $0x58] sm:$0xff]
        %v237 = vld [vmem:[%s167 + $0x60] sm:$0xff]
        %v238 = vld [vmem:[%s167 + $0x68] sm:$0xff]
        %v239 = vld [vmem:[%s167 + $0x70] sm:$0xff]
        %v240 = vld [vmem:[%s167 + $0x78] sm:$0xff]
        %241 = vmatprep.subr.mxu0 0.0
        %242 = vmatpush1.msra.mxu0 %v240
        %243 = vmatprep.subr.mxu0 0.0
        %244 = vmatpush1.msra.mxu0 %v239
        %245 = vmatprep.subr.mxu0 0.0
        %246 = vmatpush1.msra.mxu0 %v238
        %247 = vmatprep.subr.mxu0 0.0
        %248 = vmatpush1.msra.mxu0 %v237
        %249 = vmatprep.subr.mxu0 0.0
        %250 = vmatpush1.msra.mxu0 %v236
        %251 = vmatprep.subr.mxu0 0.0
        %252 = vmatpush1.msra.mxu0 %v235
        %253 = vmatprep.subr.mxu0 0.0
        %254 = vmatpush1.msra.mxu0 %v234
        %255 = vmatprep.subr.mxu0 0.0
        %256 = vmatpush1.msra.mxu0 %v233
        %257 = vmatprep.subr.mxu0 0.0
        %258 = vmatpush1.msra.mxu0 %v232
        %259 = vmatprep.subr.mxu0 0.0
        %260 = vmatpush1.msra.mxu0 %v231
        %261 = vmatprep.subr.mxu0 0.0
        %262 = vmatpush1.msra.mxu0 %v230
        %263 = vmatprep.subr.mxu0 0.0
        %264 = vmatpush1.msra.mxu0 %v229
        %265 = vmatprep.subr.mxu0 0.0
        %266 = vmatpush1.msra.mxu0 %v228
        %267 = vmatprep.subr.mxu0 0.0
        %268 = vmatpush1.msra.mxu0 %v227
        %269 = vmatprep.subr.mxu0 0.0
        %270 = vmatpush1.msra.mxu0 %v226
        %271 = vmatprep.subr.mxu0 0.0
        %272 = vmatpush1.msra.mxu0 %v225
        %273 = vmatprep.subr.mxu0 0.0
        %274 = vmatpush2.msra.mxu0 0.0
        %275 = vmatprep.subr.mxu0 0.0
        %276 = vmatpush2.msra.mxu0 0.0
        %277 = vmatprep.subr.mxu0 0.0
        %278 = vmatpush2.msra.mxu0 0.0
        %279 = vmatprep.subr.mxu0 0.0
        %280 = vmatpush2.msra.mxu0 0.0
        %281 = vmatprep.subr.mxu0 0.0
        %282 = vmatpush2.msra.mxu0 0.0
        %283 = vmatprep.subr.mxu0 0.0
        %284 = vmatpush2.msra.mxu0 0.0
        %285 = vmatprep.subr.mxu0 0.0
        %286 = vmatpush2.msra.mxu0 0.0
        %287 = vmatprep.subr.mxu0 0.0
        %288 = vmatpush2.msra.mxu0 0.0
        %289 = vmatprep.subr.mxu0 0.0
        %290 = vmatpush2.msra.mxu0 0.0
        %291 = vmatprep.subr.mxu0 0.0
        %292 = vmatpush2.msra.mxu0 0.0
        %293 = vmatprep.subr.mxu0 0.0
        %294 = vmatpush2.msra.mxu0 0.0
        %295 = vmatprep.subr.mxu0 0.0
        %296 = vmatpush2.msra.mxu0 0.0
        %297 = vmatprep.subr.mxu0 0.0
        %298 = vmatpush2.msra.mxu0 0.0
        %299 = vmatprep.subr.mxu0 0.0
        %300 = vmatpush2.msra.mxu0 0.0
        %301 = vmatprep.subr.mxu0 0.0
        %302 = vmatpush2.msra.mxu0 0.0
        %303 = vmatprep.subr.mxu0 0.0
        %304 = vmatpush2.msra.mxu0 0.0
        %305 = vmatprep.mubr.f32.mxu0 0.0
        %306 = vmatmul.mubr.f32.gmra.mxu0 %v209
        %v307 = vpop.f32.mrf.mxu0
        %v308 = vadd.f32 0.0, %v307
        %v309 = vpop.f32.mrf.mxu0
        %310 = vmatprep.mubr.f32.mxu0 0.0
        %311 = vmatmul.mubr.f32.gmra.mxu0 %v210
        %v312 = vpop.f32.mrf.mxu0
        %v313 = vadd.f32 0.0, %v312
        %v314 = vpop.f32.mrf.mxu0
        %315 = vmatprep.mubr.f32.mxu0 0.0
        %316 = vmatmul.mubr.f32.gmra.mxu0 %v211
        %v317 = vpop.f32.mrf.mxu0
        %v318 = vadd.f32 0.0, %v317
        %v319 = vpop.f32.mrf.mxu0
        %320 = vmatprep.mubr.f32.mxu0 0.0
        %321 = vmatmul.mubr.f32.gmra.mxu0 %v212
        %v322 = vpop.f32.mrf.mxu0
        %v323 = vadd.f32 0.0, %v322
        %v324 = vpop.f32.mrf.mxu0
        %325 = vmatprep.mubr.f32.mxu0 0.0
        %326 = vmatmul.mubr.f32.gmra.mxu0 %v213
        %v327 = vpop.f32.mrf.mxu0
        %v328 = vadd.f32 0.0, %v327
        %v329 = vpop.f32.mrf.mxu0
        %330 = vmatprep.mubr.f32.mxu0 0.0
        %331 = vmatmul.mubr.f32.gmra.mxu0 %v214
        %v332 = vpop.f32.mrf.mxu0
        %v333 = vadd.f32 0.0, %v332
        %v334 = vpop.f32.mrf.mxu0
        %335 = vmatprep.mubr.f32.mxu0 0.0
        %336 = vmatmul.mubr.f32.gmra.mxu0 %v215
        %v337 = vpop.f32.mrf.mxu0
        %v338 = vadd.f32 0.0, %v337
        %v339 = vpop.f32.mrf.mxu0
        %340 = vmatprep.mubr.f32.mxu0 0.0
        %341 = vmatmul.mubr.f32.gmra.mxu0 %v216
        %v342 = vpop.f32.mrf.mxu0
        %v343 = vadd.f32 0.0, %v342
        %v344 = vpop.f32.mrf.mxu0
        %345 = vmatprep.mubr.f32.mxu0 0.0
        %346 = vmatmul.mubr.f32.gmra.mxu0 %v217
        %v347 = vpop.f32.mrf.mxu0
        %v348 = vadd.f32 0.0, %v347
        %v349 = vpop.f32.mrf.mxu0
        %350 = vmatprep.mubr.f32.mxu0 0.0
        %351 = vmatmul.mubr.f32.gmra.mxu0 %v218
        %v352 = vpop.f32.mrf.mxu0
        %v353 = vadd.f32 0.0, %v352
        %v354 = vpop.f32.mrf.mxu0
        %355 = vmatprep.mubr.f32.mxu0 0.0
        %356 = vmatmul.mubr.f32.gmra.mxu0 %v219
        %v357 = vpop.f32.mrf.mxu0
        %v358 = vadd.f32 0.0, %v357
        %v359 = vpop.f32.mrf.mxu0
        %360 = vmatprep.mubr.f32.mxu0 0.0
        %361 = vmatmul.mubr.f32.gmra.mxu0 %v220
        %v362 = vpop.f32.mrf.mxu0
        %v363 = vadd.f32 0.0, %v362
        %v364 = vpop.f32.mrf.mxu0
        %365 = vmatprep.mubr.f32.mxu0 0.0
        %366 = vmatmul.mubr.f32.gmra.mxu0 %v221
        %v367 = vpop.f32.mrf.mxu0
        %v368 = vadd.f32 0.0, %v367
        %v369 = vpop.f32.mrf.mxu0
        %370 = vmatprep.mubr.f32.mxu0 0.0
        %371 = vmatmul.mubr.f32.gmra.mxu0 %v222
        %v372 = vpop.f32.mrf.mxu0
        %v373 = vadd.f32 0.0, %v372
        %v374 = vpop.f32.mrf.mxu0
        %375 = vmatprep.mubr.f32.mxu0 0.0
        %376 = vmatmul.mubr.f32.gmra.mxu0 %v223
        %v377 = vpop.f32.mrf.mxu0
        %v378 = vadd.f32 0.0, %v377
        %v379 = vpop.f32.mrf.mxu0
        %380 = vmatprep.mubr.f32.mxu0 0.0
        %381 = vmatmul.mubr.f32.gmra.mxu0 %v224
        %v382 = vpop.f32.mrf.mxu0
        %v383 = vadd.f32 0.0, %v382
        %v384 = vpop.f32.mrf.mxu0
        %385 = vdwg.mxu0
        %386 = vst [vmem:[#allocation3] sm:$0xff] %v308
        %387 = vst [vmem:[#allocation3 + $0x8] sm:$0xff] %v313
        %388 = vst [vmem:[#allocation3 + $0x10] sm:$0xff] %v318
        %389 = vst [vmem:[#allocation3 + $0x18] sm:$0xff] %v323
        %390 = vst [vmem:[#allocation3 + $0x20] sm:$0xff] %v328
        %391 = vst [vmem:[#allocation3 + $0x28] sm:$0xff] %v333
        %392 = vst [vmem:[#allocation3 + $0x30] sm:$0xff] %v338
        %393 = vst [vmem:[#allocation3 + $0x38] sm:$0xff] %v343
        %394 = vst [vmem:[#allocation3 + $0x40] sm:$0xff] %v348
        %395 = vst [vmem:[#allocation3 + $0x48] sm:$0xff] %v353
        %396 = vst [vmem:[#allocation3 + $0x50] sm:$0xff] %v358
        %397 = vst [vmem:[#allocation3 + $0x58] sm:$0xff] %v363
        %398 = vst [vmem:[#allocation3 + $0x60] sm:$0xff] %v368
        %399 = vst [vmem:[#allocation3 + $0x68] sm:$0xff] %v373
        %400 = vst [vmem:[#allocation3 + $0x70] sm:$0xff] %v378
        %401 = vst [vmem:[#allocation3 + $0x78] sm:$0xff] %v383
      $region40: #{dist2cycle_forward.1} parent=31 // pred_fallthru
        _
      %s402 = smul.u32 %s19, 128
      %s403 = scalar_lea.vmem %s1, %s402
      %v404 = vld [vmem:[%s403] sm:$0xff]
      %v405 = vld [vmem:[%s403 + $0x8] sm:$0xff]
      %v406 = vld [vmem:[%s403 + $0x10] sm:$0xff]
      %v407 = vld [vmem:[%s403 + $0x18] sm:$0xff]
      %v408 = vld [vmem:[%s403 + $0x20] sm:$0xff]
      %v409 = vld [vmem:[%s403 + $0x28] sm:$0xff]
      %v410 = vld [vmem:[%s403 + $0x30] sm:$0xff]
      %v411 = vld [vmem:[%s403 + $0x38] sm:$0xff]
      %v412 = vld [vmem:[%s403 + $0x40] sm:$0xff]
      %v413 = vld [vmem:[%s403 + $0x48] sm:$0xff]
      %v414 = vld [vmem:[%s403 + $0x50] sm:$0xff]
      %v415 = vld [vmem:[%s403 + $0x58] sm:$0xff]
      %v416 = vld [vmem:[%s403 + $0x60] sm:$0xff]
      %v417 = vld [vmem:[%s403 + $0x68] sm:$0xff]
      %v418 = vld [vmem:[%s403 + $0x70] sm:$0xff]
      %v419 = vld [vmem:[%s403 + $0x78] sm:$0xff]
      %v420 = vld [vmem:[#allocation3] sm:$0xff]
      %v421 = vld [vmem:[#allocation3 + $0x8] sm:$0xff]
      %v422 = vld [vmem:[#allocation3 + $0x10] sm:$0xff]
      %v423 = vld [vmem:[#allocation3 + $0x18] sm:$0xff]
      %v424 = vld [vmem:[#allocation3 + $0x20] sm:$0xff]
      %v425 = vld [vmem:[#allocation3 + $0x28] sm:$0xff]
      %v426 = vld [vmem:[#allocation3 + $0x30] sm:$0xff]
      %v427 = vld [vmem:[#allocation3 + $0x38] sm:$0xff]
      %v428 = vld [vmem:[#allocation3 + $0x40] sm:$0xff]
      %v429 = vld [vmem:[#allocation3 + $0x48] sm:$0xff]
      %v430 = vld [vmem:[#allocation3 + $0x50] sm:$0xff]
      %v431 = vld [vmem:[#allocation3 + $0x58] sm:$0xff]
      %v432 = vld [vmem:[#allocation3 + $0x60] sm:$0xff]
      %v433 = vld [vmem:[#allocation3 + $0x68] sm:$0xff]
      %v434 = vld [vmem:[#allocation3 + $0x70] sm:$0xff]
      %v435 = vld [vmem:[#allocation3 + $0x78] sm:$0xff]
      %436 = vmatprep.subr.mxu0 0.0
      %437 = vmatpush1.msra.mxu0 %v435
      %438 = vmatprep.subr.mxu0 0.0
      %439 = vmatpush1.msra.mxu0 %v434
      %440 = vmatprep.subr.mxu0 0.0
      %441 = vmatpush1.msra.mxu0 %v433
      %442 = vmatprep.subr.mxu0 0.0
      %443 = vmatpush1.msra.mxu0 %v432
      %444 = vmatprep.subr.mxu0 0.0
      %445 = vmatpush1.msra.mxu0 %v431
      %446 = vmatprep.subr.mxu0 0.0
      %447 = vmatpush1.msra.mxu0 %v430
      %448 = vmatprep.subr.mxu0 0.0
      %449 = vmatpush1.msra.mxu0 %v429
      %450 = vmatprep.subr.mxu0 0.0
      %451 = vmatpush1.msra.mxu0 %v428
      %452 = vmatprep.subr.mxu0 0.0
      %453 = vmatpush1.msra.mxu0 %v427
      %454 = vmatprep.subr.mxu0 0.0
      %455 = vmatpush1.msra.mxu0 %v426
      %456 = vmatprep.subr.mxu0 0.0
      %457 = vmatpush1.msra.mxu0 %v425
      %458 = vmatprep.subr.mxu0 0.0
      %459 = vmatpush1.msra.mxu0 %v424
      %460 = vmatprep.subr.mxu0 0.0
      %461 = vmatpush1.msra.mxu0 %v423
      %462 = vmatprep.subr.mxu0 0.0
      %463 = vmatpush1.msra.mxu0 %v422
      %464 = vmatprep.subr.mxu0 0.0
      %465 = vmatpush1.msra.mxu0 %v421
      %466 = vmatprep.subr.mxu0 0.0
      %467 = vmatpush1.msra.mxu0 %v420
      %468 = vmatprep.subr.mxu0 0.0
      %469 = vmatpush2.msra.mxu0 0.0
      %470 = vmatprep.subr.mxu0 0.0
      %471 = vmatpush2.msra.mxu0 0.0
      %472 = vmatprep.subr.mxu0 0.0
      %473 = vmatpush2.msra.mxu0 0.0
      %474 = vmatprep.subr.mxu0 0.0
      %475 = vmatpush2.msra.mxu0 0.0
      %476 = vmatprep.subr.mxu0 0.0
      %477 = vmatpush2.msra.mxu0 0.0
      %478 = vmatprep.subr.mxu0 0.0
      %479 = vmatpush2.msra.mxu0 0.0
      %480 = vmatprep.subr.mxu0 0.0
      %481 = vmatpush2.msra.mxu0 0.0
      %482 = vmatprep.subr.mxu0 0.0
      %483 = vmatpush2.msra.mxu0 0.0
      %484 = vmatprep.subr.mxu0 0.0
      %485 = vmatpush2.msra.mxu0 0.0
      %486 = vmatprep.subr.mxu0 0.0
      %487 = vmatpush2.msra.mxu0 0.0
      %488 = vmatprep.subr.mxu0 0.0
      %489 = vmatpush2.msra.mxu0 0.0
      %490 = vmatprep.subr.mxu0 0.0
      %491 = vmatpush2.msra.mxu0 0.0
      %492 = vmatprep.subr.mxu0 0.0
      %493 = vmatpush2.msra.mxu0 0.0
      %494 = vmatprep.subr.mxu0 0.0
      %495 = vmatpush2.msra.mxu0 0.0
      %496 = vmatprep.subr.mxu0 0.0
      %497 = vmatpush2.msra.mxu0 0.0
      %498 = vmatprep.subr.mxu0 0.0
      %499 = vmatpush2.msra.mxu0 0.0
      %500 = vmatprep.mubr.f32.mxu0 0.0
      %501 = vmatmul.mubr.f32.gmra.mxu0 %v404
      %v502 = vpop.f32.mrf.mxu0
      %v503 = vadd.f32 0.0, %v502
      %v504 = vpop.f32.mrf.mxu0
      %505 = vmatprep.mubr.f32.mxu0 0.0
      %506 = vmatmul.mubr.f32.gmra.mxu0 %v405
      %v507 = vpop.f32.mrf.mxu0
      %v508 = vadd.f32 0.0, %v507
      %v509 = vpop.f32.mrf.mxu0
      %510 = vmatprep.mubr.f32.mxu0 0.0
      %511 = vmatmul.mubr.f32.gmra.mxu0 %v406
      %v512 = vpop.f32.mrf.mxu0
      %v513 = vadd.f32 0.0, %v512
      %v514 = vpop.f32.mrf.mxu0
      %515 = vmatprep.mubr.f32.mxu0 0.0
      %516 = vmatmul.mubr.f32.gmra.mxu0 %v407
      %v517 = vpop.f32.mrf.mxu0
      %v518 = vadd.f32 0.0, %v517
      %v519 = vpop.f32.mrf.mxu0
      %520 = vmatprep.mubr.f32.mxu0 0.0
      %521 = vmatmul.mubr.f32.gmra.mxu0 %v408
      %v522 = vpop.f32.mrf.mxu0
      %v523 = vadd.f32 0.0, %v522
      %v524 = vpop.f32.mrf.mxu0
      %525 = vmatprep.mubr.f32.mxu0 0.0
      %526 = vmatmul.mubr.f32.gmra.mxu0 %v409
      %v527 = vpop.f32.mrf.mxu0
      %v528 = vadd.f32 0.0, %v527
      %v529 = vpop.f32.mrf.mxu0
      %530 = vmatprep.mubr.f32.mxu0 0.0
      %531 = vmatmul.mubr.f32.gmra.mxu0 %v410
      %v532 = vpop.f32.mrf.mxu0
      %v533 = vadd.f32 0.0, %v532
      %v534 = vpop.f32.mrf.mxu0
      %535 = vmatprep.mubr.f32.mxu0 0.0
      %536 = vmatmul.mubr.f32.gmra.mxu0 %v411
      %v537 = vpop.f32.mrf.mxu0
      %v538 = vadd.f32 0.0, %v537
      %v539 = vpop.f32.mrf.mxu0
      %540 = vmatprep.mubr.f32.mxu0 0.0
      %541 = vmatmul.mubr.f32.gmra.mxu0 %v412
      %v542 = vpop.f32.mrf.mxu0
      %v543 = vadd.f32 0.0, %v542
      %v544 = vpop.f32.mrf.mxu0
      %545 = vmatprep.mubr.f32.mxu0 0.0
      %546 = vmatmul.mubr.f32.gmra.mxu0 %v413
      %v547 = vpop.f32.mrf.mxu0
      %v548 = vadd.f32 0.0, %v547
      %v549 = vpop.f32.mrf.mxu0
      %550 = vmatprep.mubr.f32.mxu0 0.0
      %551 = vmatmul.mubr.f32.gmra.mxu0 %v414
      %v552 = vpop.f32.mrf.mxu0
      %v553 = vadd.f32 0.0, %v552
      %v554 = vpop.f32.mrf.mxu0
      %555 = vmatprep.mubr.f32.mxu0 0.0
      %556 = vmatmul.mubr.f32.gmra.mxu0 %v415
      %v557 = vpop.f32.mrf.mxu0
      %v558 = vadd.f32 0.0, %v557
      %v559 = vpop.f32.mrf.mxu0
      %560 = vmatprep.mubr.f32.mxu0 0.0
      %561 = vmatmul.mubr.f32.gmra.mxu0 %v416
      %v562 = vpop.f32.mrf.mxu0
      %v563 = vadd.f32 0.0, %v562
      %v564 = vpop.f32.mrf.mxu0
      %565 = vmatprep.mubr.f32.mxu0 0.0
      %566 = vmatmul.mubr.f32.gmra.mxu0 %v417
      %v567 = vpop.f32.mrf.mxu0
      %v568 = vadd.f32 0.0, %v567
      %v569 = vpop.f32.mrf.mxu0
      %570 = vmatprep.mubr.f32.mxu0 0.0
      %571 = vmatmul.mubr.f32.gmra.mxu0 %v418
      %v572 = vpop.f32.mrf.mxu0
      %v573 = vadd.f32 0.0, %v572
      %v574 = vpop.f32.mrf.mxu0
      %575 = vmatprep.mubr.f32.mxu0 0.0
      %576 = vmatmul.mubr.f32.gmra.mxu0 %v419
      %v577 = vpop.f32.mrf.mxu0
      %v578 = vadd.f32 0.0, %v577
      %v579 = vpop.f32.mrf.mxu0
      %580 = vdwg.mxu0
      %v581 = vmax.f32 %v503, 0.0
      %v582 = vmax.f32 %v508, 0.0
      %v583 = vmax.f32 %v513, 0.0
      %v584 = vmax.f32 %v518, 0.0
      %v585 = vmax.f32 %v523, 0.0
      %v586 = vmax.f32 %v528, 0.0
      %v587 = vmax.f32 %v533, 0.0
      %v588 = vmax.f32 %v538, 0.0
      %v589 = vmax.f32 %v543, 0.0
      %v590 = vmax.f32 %v548, 0.0
      %v591 = vmax.f32 %v553, 0.0
      %v592 = vmax.f32 %v558, 0.0
      %v593 = vmax.f32 %v563, 0.0
      %v594 = vmax.f32 %v568, 0.0
      %v595 = vmax.f32 %v573, 0.0
      %v596 = vmax.f32 %v578, 0.0
      %p597 = scmp.lt.s32.totalorder %s18, 1
      // Predicated region
      $region41: #{dist2cycle_forward.1} parent=31 // pred_check
        %p598 = pneg %p597
      $region42: #{dist2cycle_forward.1} parent=31 // pred_check_branch
        %600 = sbr.rel (%p598) target = $region44
      $region43: #{dist2cycle_forward.1} parent=31 // pred_region
        %s601 = scalar_lea.vmem [#allocation2], %s402
        %602 = vst [vmem:[%s601] sm:$0xff] %v581
        %603 = vst [vmem:[%s601 + $0x8] sm:$0xff] %v582
        %604 = vst [vmem:[%s601 + $0x10] sm:$0xff] %v583
        %605 = vst [vmem:[%s601 + $0x18] sm:$0xff] %v584
        %606 = vst [vmem:[%s601 + $0x20] sm:$0xff] %v585
        %607 = vst [vmem:[%s601 + $0x28] sm:$0xff] %v586
        %608 = vst [vmem:[%s601 + $0x30] sm:$0xff] %v587
        %609 = vst [vmem:[%s601 + $0x38] sm:$0xff] %v588
        %610 = vst [vmem:[%s601 + $0x40] sm:$0xff] %v589
        %611 = vst [vmem:[%s601 + $0x48] sm:$0xff] %v590
        %612 = vst [vmem:[%s601 + $0x50] sm:$0xff] %v591
        %613 = vst [vmem:[%s601 + $0x58] sm:$0xff] %v592
        %614 = vst [vmem:[%s601 + $0x60] sm:$0xff] %v593
        %615 = vst [vmem:[%s601 + $0x68] sm:$0xff] %v594
        %616 = vst [vmem:[%s601 + $0x70] sm:$0xff] %v595
        %617 = vst [vmem:[%s601 + $0x78] sm:$0xff] %v596
      $region44: #{dist2cycle_forward.1} parent=31 // pred_fallthru
        _
      %p618 = scmp.eq.s32.totalorder %s18, 1
      // Predicated region
      $region45: #{dist2cycle_forward.1} parent=31 // pred_check
        %p619 = pneg %p618
      $region46: #{dist2cycle_forward.1} parent=31 // pred_check_branch
        %621 = sbr.rel (%p619) target = $region48
      $region47: #{dist2cycle_forward.1} parent=31 // pred_region
        %s622 = scalar_lea.vmem %s3, %s402
        %623 = vst [vmem:[%s622] sm:$0xff] %v581
        %624 = vst [vmem:[%s622 + $0x8] sm:$0xff] %v582
        %625 = vst [vmem:[%s622 + $0x10] sm:$0xff] %v583
        %626 = vst [vmem:[%s622 + $0x18] sm:$0xff] %v584
        %627 = vst [vmem:[%s622 + $0x20] sm:$0xff] %v585
        %628 = vst [vmem:[%s622 + $0x28] sm:$0xff] %v586
        %629 = vst [vmem:[%s622 + $0x30] sm:$0xff] %v587
        %630 = vst [vmem:[%s622 + $0x38] sm:$0xff] %v588
        %631 = vst [vmem:[%s622 + $0x40] sm:$0xff] %v589
        %632 = vst [vmem:[%s622 + $0x48] sm:$0xff] %v590
        %633 = vst [vmem:[%s622 + $0x50] sm:$0xff] %v591
        %634 = vst [vmem:[%s622 + $0x58] sm:$0xff] %v592
        %635 = vst [vmem:[%s622 + $0x60] sm:$0xff] %v593
        %636 = vst [vmem:[%s622 + $0x68] sm:$0xff] %v594
        %637 = vst [vmem:[%s622 + $0x70] sm:$0xff] %v595
        %638 = vst [vmem:[%s622 + $0x78] sm:$0xff] %v596
      $region48: #{dist2cycle_forward.1} parent=31 // pred_fallthru
        _
      // Predicated region
      $region49: #{dist2cycle_forward.1} parent=31 // pred_check
        %p639 = pneg %p107
      $region50: #{dist2cycle_forward.1} parent=31 // pred_check_branch
        %641 = sbr.rel (%p639) target = $region52
      $region51: #{dist2cycle_forward.1} parent=31 // pred_region
        _
      $region52: #{dist2cycle_forward.1} parent=31 // pred_fallthru
        _
      // Predicated region
      $region53: #{dist2cycle_forward.1} parent=31 // pred_check
        %p642 = pneg %p107
      $region54: #{dist2cycle_forward.1} parent=31 // pred_check_branch
        %644 = sbr.rel (%p642) target = $region56
      $region55: #{dist2cycle_forward.1} parent=31 // pred_region
        _
      $region56: #{dist2cycle_forward.1} parent=31 // pred_fallthru
        _
    $region32: #{dist2cycle_forward.1} parent=5 // pred_fallthru
      _
    %p645 = scmp.le.s32.totalorder 2, %s9
    // Predicated region
    $region57: #{dist2cycle_forward.1} parent=5 // pred_check
      %p646 = pneg %p645
    $region58: #{dist2cycle_forward.1} parent=5 // pred_check_branch
      %648 = sbr.rel (%p646) target = $region60
    $region59: #{dist2cycle_forward.1} parent=5 // pred_region
      %s649 = ssub.s32 %s9, 2
    $region60: #{dist2cycle_forward.1} parent=5 // pred_fallthru
      _
  $region6: #{dist2cycle_forward.1} parent=0 // loop_footer
    %s13 = sadd.s32 1, %s9
  $region7: #{dist2cycle_forward.1} parent=0 // loop_footer_branch
    %8 = sbr.rel target = $region3
  $region8: #{dist2cycle_forward.1} parent=0 // loop_exit
    _

</llo_original>
